<compile_context>
chip_gen: v5e
topology: v5e:2x2
jax: 0.10.0
libtpu: 0.0.40
codegen_flags: <defaults>
</compile_context>

<pallas_src>
import jax
import jax.numpy as jnp
from jax.experimental import pallas as pl
from jax.experimental.pallas import tpu as pltpu


# ----------------------------------------------------------------------------
# Kernel
# ----------------------------------------------------------------------------
def _eca_kernel(x_ref, m_ref, out_ref):
    """Fused ECA forward for one batch tile.

    x_ref   : (Bt, C, N)  activations in their native dtype, N = H*W
    m_ref   : (C, C)      banded conv matrix, gate_pre = means @ M
    out_ref : (Bt, C, N)  gated activations (same dtype as x)
    """
    x = x_ref[...]                                     # native dtype, no f32 copy

    # AdaptiveAvgPool2d(1): per-(batch, channel) spatial mean with f32 accumulation.
    means = jnp.mean(x, axis=-1, dtype=jnp.float32)                  # (Bt, C)

    # Conv1d(1, 1, k, padding=(k-1)//2, bias=False) across channels, expressed
    # exactly as a tiny banded matmul on the MXU.
    gate_pre = jnp.dot(means, m_ref[...],
                       preferred_element_type=jnp.float32)           # (Bt, C)

    # Sigmoid gate in f32 on a tiny (Bt, C) tile, then cast once to the
    # activation dtype so the big multiply stays in the native dtype.
    gate = 1.0 / (1.0 + jnp.exp(-gate_pre))                          # (Bt, C)
    gate = gate.astype(out_ref.dtype)

    # Per-channel gating of the full activation tile (no full-size f32 temp).
    out_ref[...] = (x * gate[:, :, None]).astype(out_ref.dtype)


# ----------------------------------------------------------------------------
# Wrapper helpers
# ----------------------------------------------------------------------------
def _build_conv_matrix(conv_w, channels):
    """Banded (C, C) matrix M with gate_pre = means @ M reproducing
    torch.nn.Conv1d(1, 1, k, padding=(k-1)//2, bias=False) on a length-C
    sequence with zero padding:  M[j, i] = w[j - i + pad] if in range else 0.
    """
    k = conv_w.shape[0]
    pad = (k - 1) // 2
    j = jnp.arange(channels)[:, None]     # input (channel) index
    i = jnp.arange(channels)[None, :]     # output (channel) index
    t = j - i + pad
    valid = (t >= 0) & (t < k)
    return jnp.where(valid, conv_w[jnp.clip(t, 0, k - 1)], 0.0).astype(jnp.float32)


def _vmem_capacity_bytes():
    """Physical VMEM of the current chip; conservative 64 MiB (v7x) fallback."""
    try:
        info = pltpu.get_tpu_info()
        cap = getattr(info, "vmem_capacity_bytes", None)
        if cap:
            return int(cap)
    except Exception:
        pass
    return 64 << 20


def _pick_block_b(B, C, N, itemsize, *, tile_budget_bytes, min_steps=4):
    """Largest batch tile that (a) divides B, (b) keeps the double-buffered
    x + out tiles within tile_budget_bytes, and (c) leaves the grid with at
    least min(min_steps, B) steps so the pipeline can overlap input DMA,
    compute, and output writeback, and both v7x TensorCores get work."""
    per_batch = 2 * 2 * C * N * itemsize          # (x + out) x double buffering
    bb_mem = max(1, tile_budget_bytes // max(per_batch, 1))
    bb_par = max(1, B // min(min_steps, B)) if B > 1 else 1
    bb = int(max(1, min(B, bb_mem, bb_par)))
    while B % bb:
        bb -= 1
    return bb


# ----------------------------------------------------------------------------
# Forward
# ----------------------------------------------------------------------------
def eca_forward(x, conv_w):
    """ECA forward.  x: (B, C, H, W) NCHW (same as the PyTorch module),
    conv_w: (k,) Conv1d weight (squeezed from torch's (1, 1, k))."""
    B, C, H, W = x.shape
    N = H * W
    itemsize = jnp.dtype(x.dtype).itemsize

    x_flat = x.reshape(B, C, N)                    # lane-dense last dim
    M = _build_conv_matrix(conv_w, C)              # (C, C) f32 constant

    # VMEM budgeting: ~75% of physical VMEM, minus the double-buffered conv
    # matrix (its index_map is constant so it is DMA'd only once, but it still
    # occupies two buffers), minus a little compiler headroom.
    cap = _vmem_capacity_bytes()
    safe_cap = (cap * 3) // 4
    m_bytes = 2 * C * C * 4
    tile_budget = max(4 << 20, safe_cap - m_bytes - (2 << 20))

    block_b = _pick_block_b(B, C, N, itemsize, tile_budget_bytes=tile_budget)
    grid = (B // block_b,)

    tile_bytes = 2 * 2 * block_b * C * N * itemsize
    vmem_limit = int(min(safe_cap, max(32 << 20, tile_bytes + m_bytes + (2 << 20))))

    out_flat = pl.pallas_call(
        _eca_kernel,
        out_shape=jax.ShapeDtypeStruct((B, C, N), x.dtype),
        grid_spec=pltpu.PrefetchScalarGridSpec(
            num_scalar_prefetch=0,
            grid=grid,
            in_specs=[
                pl.BlockSpec((block_b, C, N), lambda b: (b, 0, 0)),
                pl.BlockSpec((C, C), lambda b: (0, 0)),   # grid-invariant: one DMA
            ],
            out_specs=pl.BlockSpec((block_b, C, N), lambda b: (b, 0, 0)),
        ),
        compiler_params=pltpu.CompilerParams(
            dimension_semantics=("parallel",),
            vmem_limit_bytes=vmem_limit),
    )(x_flat, M)

    return out_flat.reshape(B, C, H, W)


# ----------------------------------------------------------------------------
# Pure-JAX reference (mirrors the PyTorch forward, computed in f32)
# ----------------------------------------------------------------------------
def eca_reference(x, conv_w):
    x = x.astype(jnp.float32)
    B, C, H, W = x.shape
    k = conv_w.shape[0]
    pad = (k - 1) // 2

    y = x.mean(axis=(2, 3))                                   # (B, C)
    yp = jnp.pad(y, ((0, 0), (pad, pad)))                     # zero padding
    conv = jnp.zeros((B, C), dtype=jnp.float32)
    for t in range(k):
        conv = conv + conv_w[t] * yp[:, t:t + C]
    gate = 1.0 / (1.0 + jnp.exp(-conv))                       # sigmoid
    return x * gate[:, :, None, None]


# ----------------------------------------------------------------------------
# Self-test
# ----------------------------------------------------------------------------
if __name__ == "__main__":
    key = jax.random.PRNGKey(0)
    kx, kw, kx2 = jax.random.split(key, 3)

    k_size = 3
    conv_w = 0.5 * jax.random.normal(kw, (k_size,), dtype=jnp.float32)

    # Test 1: small f32 shape (grid has 2 steps -> pipelined, megacore-friendly)
    B, C, H, W = 2, 32, 16, 16
    x = jax.random.normal(kx, (B, C, H, W), dtype=jnp.float32)
    out = jax.block_until_ready(eca_forward(x, conv_w))
    ref = jax.block_until_ready(eca_reference(x, conv_w))
    assert out.shape == (B, C, H, W), out.shape
    assert jnp.allclose(out, ref, rtol=1e-4, atol=1e-4), \
        float(jnp.max(jnp.abs(out - ref)))

    # Test 2: bf16 inputs exercise the no-upcast path (f32 mean accumulation,
    # native-dtype gating multiply).
    B2 = 4
    x2 = jax.random.normal(kx2, (B2, C, H, W), dtype=jnp.float32).astype(jnp.bfloat16)
    out2 = jax.block_until_ready(eca_forward(x2, conv_w))
    ref2 = jax.block_until_ready(eca_reference(x2, conv_w))
    assert out2.dtype == jnp.bfloat16, out2.dtype
    assert jnp.allclose(out2.astype(jnp.float32), ref2, rtol=5e-2, atol=5e-2), \
        float(jnp.max(jnp.abs(out2.astype(jnp.float32) - ref2)))

    print("KERNEL_OK")
</pallas_src>

<mosaic_0001>
module attributes {stable_mosaic.version = 11 : i64} {
  func.func @_eca_kernel(%arg0: i32, %arg1: memref<1x32x256xf32, #tpu.memory_space<vmem>>, %arg2: memref<32x32xf32, #tpu.memory_space<vmem>>, %arg3: memref<1x32x256xf32, #tpu.memory_space<vmem>>) attributes {dimension_semantics = [#tpu.dimension_semantics<parallel>], iteration_bounds = array<i64: 2>, scalar_prefetch = 0 : i64, scratch_operands = 0 : i64, tpu.core_type = #tpu.core_type<tc>, window_params = [{transform_indices = @transform_0, window_bounds = array<i64: 1, 32, 256>}, {pipeline_mode = #tpu.pipeline_mode<synchronous>, transform_indices = @transform_1, window_bounds = array<i64: 32, 32>}, {transform_indices = @transform_2, window_bounds = array<i64: 1, 32, 256>}]} {
    %c0 = arith.constant 0 : index
    %c0_0 = arith.constant 0 : index
    %c0_1 = arith.constant 0 : index
    %0 = vector.load %arg1[%c0, %c0_0, %c0_1] : memref<1x32x256xf32, #tpu.memory_space<vmem>>, vector<1x32x256xf32>
    %cst = arith.constant dense<0.000000e+00> : vector<1x32xf32>
    %1 = vector.multi_reduction <add>, %0, %cst [2] : vector<1x32x256xf32> to vector<1x32xf32>
    %cst_2 = arith.constant 2.560000e+02 : f32
    %2 = vector.broadcast %cst_2 : f32 to vector<1x32xf32>
    %3 = arith.divf %1, %2 : vector<1x32xf32>
    %c0_3 = arith.constant 0 : index
    %c0_4 = arith.constant 0 : index
    %4 = vector.load %arg2[%c0_3, %c0_4] : memref<32x32xf32, #tpu.memory_space<vmem>>, vector<32x32xf32>
    %cst_5 = arith.constant dense<0.000000e+00> : vector<1x32xf32>
    %5 = tpu.matmul %3, %4, %cst_5 {dimension_numbers = #tpu.dot_dimension_numbers<[1], [0], [0], [1], [0, 0, 1, 1], [], []>} : vector<1x32xf32>, vector<32x32xf32>, vector<1x32xf32> -> vector<1x32xf32>
    %cst_6 = arith.constant 0.000000e+00 : f32
    %6 = vector.broadcast %cst_6 : f32 to vector<1x32xf32>
    %7 = arith.subf %6, %5 : vector<1x32xf32>
    %8 = math.exp %7 : vector<1x32xf32>
    %cst_7 = arith.constant 1.000000e+00 : f32
    %9 = vector.broadcast %cst_7 : f32 to vector<1x32xf32>
    %10 = arith.addf %9, %8 : vector<1x32xf32>
    %cst_8 = arith.constant 1.000000e+00 : f32
    %11 = vector.broadcast %cst_8 : f32 to vector<1x32xf32>
    %12 = arith.divf %11, %10 : vector<1x32xf32>
    %13 = vector.shape_cast %12 : vector<1x32xf32> to vector<1x32x1xf32>
    %14 = vector.broadcast %13 : vector<1x32x1xf32> to vector<1x32x256xf32>
    %15 = arith.mulf %0, %14 : vector<1x32x256xf32>
    %c0_9 = arith.constant 0 : index
    %c0_10 = arith.constant 0 : index
    %c0_11 = arith.constant 0 : index
    %16 = vector.load %arg3[%c0_9, %c0_10, %c0_11] : memref<1x32x256xf32, #tpu.memory_space<vmem>>, vector<1x32x256xf32>
    tpu.vector_store %arg3[%c0_9, %c0_10, %c0_11], %15 {strides = array<i32>} : memref<1x32x256xf32, #tpu.memory_space<vmem>>, vector<1x32x256xf32>,
    return
  }
  func.func @transform_0(%arg0: i32) -> (i32, i32, i32) {
    %c0_i32 = arith.constant 0 : i32
    %c0_i32_0 = arith.constant 0 : i32
    %c0_i32_1 = arith.constant 0 : i32
    return %arg0, %c0_i32, %c0_i32_0 : i32, i32, i32
  }
  func.func @transform_1(%arg0: i32) -> (i32, i32) {
    %c0_i32 = arith.constant 0 : i32
    %c0_i32_0 = arith.constant 0 : i32
    %c0_i32_1 = arith.constant 0 : i32
    return %c0_i32, %c0_i32_0 : i32, i32
  }
  func.func @transform_2(%arg0: i32) -> (i32, i32, i32) {
    %c0_i32 = arith.constant 0 : i32
    %c0_i32_0 = arith.constant 0 : i32
    %c0_i32_1 = arith.constant 0 : i32
    return %arg0, %c0_i32, %c0_i32_0 : i32, i32, i32
  }
}

</mosaic_0001>

<llo_original>
// kernel: tpu_custom_call.1
$region0: #{tpu_custom_call.1}
  #allocation0 [shape = 'u32[]', space=smem, size = 0x4, offset = 0x4, fixed_abs, tag = 'smem constant byte address 0x4 - core index']
  #allocation1 [shape = 'u32[72,128]{1,0:T(1,128)}', space=vmem, size = 0x9000, scoped, tag = 'internal scratch']
  %s0 = inlined_call_operand.hbm [shape: f32[2,32,256], index: 0, kind: input, shape index: {}]
  %s1 = inlined_call_operand.hbm [shape: f32[32,32], index: 1, kind: input, shape index: {}]
  %s2 = inlined_call_operand.hbm [shape: f32[2,32,256], index: 2, kind: output, shape index: {}]
  %s3 = sld [smem:[#allocation0]]
  $region49: #{tpu_custom_call.1} parent=0
    _
  %s5 = ssub.s32 1, %s3
  %s6 = scalar_select 0, %s5, %s3
  $region1: #{tpu_custom_call.1} parent=0
    #allocation2 [shape = 'u8[65536]{0}', space=vmem, size = 0x10000, scoped, tag = 'input window, operand 0']
    #allocation3 [shape = 's32[2]{0}', space=sflag, size = 0x8, scoped, tag = 'scoped memory for tpu_custom_call.1']
    #allocation4 [shape = 's32[2]{0}', space=sflag, size = 0x8, scoped, tag = 'scoped memory for tpu_custom_call.1']
    #allocation5 [shape = 'u8[16384]{0}', space=vmem, size = 0x4000, scoped, tag = 'input window, operand 1, single buffered']
    #allocation6 [shape = 's32[1]{0}', space=sflag, size = 0x4, scoped, tag = 'scoped memory for tpu_custom_call.1']
    #allocation7 [shape = 'u8[65536]{0}', space=vmem, size = 0x10000, scoped, tag = 'output window, operand 0']
    %7 = vsyncpa [#allocation3], 0
    %s8 = scalar_lea.sflag [#allocation3], 1
    %9 = vsyncpa %s8, 0
    %10 = vsyncpa [#allocation6], 0
    %11 = vsyncpa [#allocation4], 0
    %s12 = scalar_lea.sflag [#allocation4], 1
    %13 = vsyncpa %s12, 0
    loop: start=0, step=1, limit=4
    $region2: #{tpu_custom_call.1} parent=1 // loop_pre_header
      _
    $region3: #{tpu_custom_call.1} parent=1 // loop_header
      %s15 = sphi 0, %s19
      %p16 = scmp.ge.s32.totalorder %s15, 4
      %s25 = sphi 0, %s27
      %s28 = sphi 0, %s25
      %s29 = sphi 0, %s28
      %s45 = sphi 0, %s29
      %s49 = sphi 0, %s49
      %s51 = sphi 0, %s49
      %s52 = sphi 0, %s51
      %s66 = sphi 0, %s52
      %s72 = sphi 0, %s74
      %s75 = sphi 0, %s72
      %s76 = sphi 0, %s75
      %s92 = sphi 0, %s76
    $region4: #{tpu_custom_call.1} parent=1 // loop_header_branch
      %18 = sbr.rel (%p16) target = $region8
    $region5: #{tpu_custom_call.1} parent=1 // loop_body
      %s20 = ssub.s32 %s15, 1
      %s21 = ssub.s32 %s15, 2
      %s22 = sadd.s32 %s15, 1
      %s23 = ssub.s32 %s15, %s22
      %p24 = scmp.eq.s32.totalorder %s23, 0
      %s26 = sadd.s32 %s25, 1
      %s27 = scalar_select %p24, %s25, %s26
      %p30 = pneg %p24
      %p31 = scmp.eq.s32.totalorder %s15, 1
      %p32 = por %p30, %p31
      %p33 = scmp.ne.s32.totalorder %s25, %s28
      %p34 = scmp.eq.s32.totalorder %s15, 0
      %p35 = por %p33, %p34
      %p36 = scmp.ne.s32.totalorder %s25, %s28
      %p37 = scmp.eq.s32.totalorder %s20, 1
      %p38 = por %p36, %p37
      %p39 = scmp.ne.s32.totalorder %s28, %s29
      %p40 = scmp.eq.s32.totalorder %s20, 0
      %p41 = por %p39, %p40
      %p42 = scmp.ne.s32.totalorder %s28, %s29
      %p43 = scmp.eq.s32.totalorder %s21, 1
      %p44 = por %p42, %p43
      %p46 = scmp.ne.s32.totalorder %s29, %s45
      %p47 = scmp.eq.s32.totalorder %s21, 0
      %p48 = por %p46, %p47
      %s50 = sadd.s32 %s49, 1
      %p53 = scmp.eq.s32.totalorder %s15, 1
      %p54 = scmp.ne.s32.totalorder %s49, %s51
      %p55 = scmp.eq.s32.totalorder %s15, 0
      %p56 = por %p54, %p55
      %p57 = scmp.ne.s32.totalorder %s49, %s51
      %p58 = scmp.eq.s32.totalorder %s20, 1
      %p59 = por %p57, %p58
      %p60 = scmp.ne.s32.totalorder %s51, %s52
      %p61 = scmp.eq.s32.totalorder %s20, 0
      %p62 = por %p60, %p61
      %p63 = scmp.ne.s32.totalorder %s51, %s52
      %p64 = scmp.eq.s32.totalorder %s21, 1
      %p65 = por %p63, %p64
      %p67 = scmp.ne.s32.totalorder %s52, %s66
      %p68 = scmp.eq.s32.totalorder %s21, 0
      %p69 = por %p67, %p68
      %s70 = ssub.s32 %s15, %s22
      %p71 = scmp.eq.s32.totalorder %s70, 0
      %s73 = sadd.s32 %s72, 1
      %s74 = scalar_select %p71, %s72, %s73
      %p77 = pneg %p71
      %p78 = scmp.eq.s32.totalorder %s15, 1
      %p79 = por %p77, %p78
      %p80 = scmp.ne.s32.totalorder %s72, %s75
      %p81 = scmp.eq.s32.totalorder %s15, 0
      %p82 = por %p80, %p81
      %p83 = scmp.ne.s32.totalorder %s72, %s75
      %p84 = scmp.eq.s32.totalorder %s20, 1
      %p85 = por %p83, %p84
      %p86 = scmp.ne.s32.totalorder %s75, %s76
      %p87 = scmp.eq.s32.totalorder %s20, 0
      %p88 = por %p86, %p87
      %p89 = scmp.ne.s32.totalorder %s75, %s76
      %p90 = scmp.eq.s32.totalorder %s21, 1
      %p91 = por %p89, %p90
      %p93 = scmp.ne.s32.totalorder %s76, %s92
      %p94 = scmp.eq.s32.totalorder %s21, 0
      %p95 = por %p93, %p94
      %p96 = scmp.le.s32.totalorder 1, %s15
      %p97 = scmp.lt.s32.totalorder %s15, 3
      %p98 = pnand %p96, %p97
      %p99 = pneg %p98
      // Predicated region
      $region9: #{tpu_custom_call.1} parent=5 // pred_check
        _
      $region10: #{tpu_custom_call.1} parent=5 // pred_check_branch
        %101 = sbr.rel (%p98) target = $region12
      $region11: #{tpu_custom_call.1} parent=5 // pred_region
        %s102 = ssub.s32 %s15, 1
        // Predicated region
        $region13: #{tpu_custom_call.1} parent=11 // pred_check
          %p103 = pneg %p62
        $region14: #{tpu_custom_call.1} parent=11 // pred_check_branch
          %105 = sbr.rel (%p103) target = $region16
        $region15: #{tpu_custom_call.1} parent=11 // pred_region
          %107 = vsyncadd [#allocation6], 0
          %s108 = sshll.u32 %s1, 4
          %s109 = int_to_ptr.hbm [resolvable:$true] %s108
          %s110 = sshll.u32 [#allocation5], 4
          %s111 = int_to_ptr.vmem [resolvable:$true] %s110
          %116 = dma.hbm_to_vmem [thread:$0]  %s109, 512, %s111, [#allocation6], 128, 128, 8
        $region16: #{tpu_custom_call.1} parent=11 // pred_fallthru
          _
      $region12: #{tpu_custom_call.1} parent=5 // pred_fallthru
        _
      %p117 = scmp.lt.s32.totalorder %s15, 2
      // Predicated region
      $region17: #{tpu_custom_call.1} parent=5 // pred_check
        %p118 = pneg %p117
      $region18: #{tpu_custom_call.1} parent=5 // pred_check_branch
        %120 = sbr.rel (%p118) target = $region20
      $region19: #{tpu_custom_call.1} parent=5 // pred_region
        // Predicated region
        $region21: #{tpu_custom_call.1} parent=19 // pred_check
          %p121 = pneg %p35
        $region22: #{tpu_custom_call.1} parent=19 // pred_check_branch
          %123 = sbr.rel (%p121) target = $region24
        $region23: #{tpu_custom_call.1} parent=19 // pred_region
          %s124 = sand.u32 %s25, 1
          %s125 = scalar_lea.sflag [#allocation3], %s124
          %s126 = sand.u32 %s25, 1
          %s127 = smul.addr %s126, 64
          %s128 = scalar_lea.vmem [#allocation2], %s127
          %130 = vsyncadd %s125, 0
          %s131 = smul.addr %s15, 8
          %s132 = smul.addr %s131, 8
          %s133 = scalar_lea.hbm %s0, %s132
          %s134 = sshll.u32 %s133, 4
          %s135 = int_to_ptr.hbm [resolvable:$true] %s134
          %s136 = sshll.u32 %s128, 4
          %s137 = int_to_ptr.vmem [resolvable:$true] %s136
          %142 = dma.hbm_to_vmem [thread:$0]  %s135, 1024, %s137, %s125, 256, 256, 16
        $region24: #{tpu_custom_call.1} parent=19 // pred_fallthru
          _
      $region20: #{tpu_custom_call.1} parent=5 // pred_fallthru
        _
      %p143 = scmp.le.s32.totalorder 1, %s15
      %p144 = scmp.lt.s32.totalorder %s15, 3
      %p145 = pnand %p143, %p144
      %p146 = pneg %p145
      // Predicated region
      $region25: #{tpu_custom_call.1} parent=5 // pred_check
        _
      $region26: #{tpu_custom_call.1} parent=5 // pred_check_branch
        %148 = sbr.rel (%p145) target = $region28
      $region27: #{tpu_custom_call.1} parent=5 // pred_region
        %s149 = ssub.s32 %s15, 1
        %s150 = sand.u32 %s28, 1
        %s151 = scalar_lea.sflag [#allocation3], %s150
        %s152 = sand.u32 %s28, 1
        %s153 = smul.addr %s152, 64
        %s154 = scalar_lea.vmem [#allocation2], %s153
        // Predicated region
        $region29: #{tpu_custom_call.1} parent=27 // pred_check
          %p155 = pneg %p41
        $region30: #{tpu_custom_call.1} parent=27 // pred_check_branch
          %157 = sbr.rel (%p155) target = $region32
        $region31: #{tpu_custom_call.1} parent=27 // pred_region
          %159 = dma.done %s151, 1024
        $region32: #{tpu_custom_call.1} parent=27 // pred_fallthru
          _
        // Predicated region
        $region33: #{tpu_custom_call.1} parent=27 // pred_check
          %p160 = pneg %p62
        $region34: #{tpu_custom_call.1} parent=27 // pred_check_branch
          %162 = sbr.rel (%p160) target = $region36
        $region35: #{tpu_custom_call.1} parent=27 // pred_region
          %164 = dma.done [#allocation6], 512
        $region36: #{tpu_custom_call.1} parent=27 // pred_fallthru
          _
        %s165 = sand.u32 %s28, 1
        %s166 = scalar_lea.sflag [#allocation3], %s165
        %s167 = sand.u32 %s28, 1
        %s168 = smul.addr %s167, 64
        %s169 = scalar_lea.vmem [#allocation2], %s168
        %p170 = pneg %p41
        %p171 = pneg %p38
        %p172 = pneg %p62
        %p173 = pneg %p59
        %p174 = pneg %p88
        %p175 = pneg %p85
        %s176 = sand.u32 %s75, 1
        %s177 = scalar_lea.sflag [#allocation4], %s176
        %s178 = sand.u32 %s75, 1
        %s179 = smul.addr %s178, 64
        %s180 = scalar_lea.vmem [#allocation7], %s179
        %v181 = vld [vmem:[%s154] sm:$0xff]
        %v182 = vld [vmem:[%s154 + $0x8] sm:$0xff]
        %v183 = vld [vmem:[%s154 + $0x10] sm:$0xff]
        %v184 = vld [vmem:[%s154 + $0x18] sm:$0xff]
        %v185 = vld [vmem:[%s154 + $0x20] sm:$0xff]
        %v186 = vld [vmem:[%s154 + $0x28] sm:$0xff]
        %v187 = vld [vmem:[%s154 + $0x30] sm:$0xff]
        %v188 = vld [vmem:[%s154 + $0x38] sm:$0xff]
        %v189 = vadd.f32 %v181, %v182
        %190 = vadd.xlane.f32.xlu0 %v189
        %v191 = vpop.xlane.xlu0 %190
        %v192 = vadd.f32 %v183, %v184
        %193 = vadd.xlane.f32.xlu0 %v192
        %v194 = vpop.xlane.xlu0 %193
        %v195 = vadd.f32 %v185, %v186
        %196 = vadd.xlane.f32.xlu0 %v195
        %v197 = vpop.xlane.xlu0 %196
        %v198 = vadd.f32 %v187, %v188
        %199 = vadd.xlane.f32.xlu0 %v198
        %v200 = vpop.xlane.xlu0 %199
        %v201 = vrcp.pop 256.0
        %v202 = vmul.f32 256.0, %v201
        %v203 = vsub.f32 1.0, %v202
        %v204 = vmul.f32 %v201, %v203
        %v205 = vadd.f32 %v201, %v204
        %vm206 = vweird.f32 %v201
        %v207 = vsel %vm206, %v201, %v205
        %v208 = vmul.f32 %v191, %v207
        %v209 = vmul.f32 %v194, %v207
        %v210 = vmul.f32 %v197, %v207
        %v211 = vmul.f32 %v200, %v207
        %v212 = vld [vmem:[#allocation5] sm:$0xff]
        %v213 = vld [vmem:[#allocation5 + $0x8] sm:$0xff]
        %v214 = vld [vmem:[#allocation5 + $0x10] sm:$0xff]
        %v215 = vld [vmem:[#allocation5 + $0x18] sm:$0xff]
        %v220 = vlaneseq
        %v221 = vand.u32 %v220, 127
        %v222 = vperm.slane %v208, %v221
        %v223 = vadd.s32 %v221, 4294967288
        %v224 = vperm.slane %v209, %v223
        %vm225 = vcmask 130112
        %v226 = vsel %vm225, %v224, %v222
        %v227 = vadd.s32 %v221, 4294967280
        %v228 = vperm.slane %v210, %v227
        %vm229 = vcmask 195712
        %v230 = vsel %vm229, %v228, %v226
        %v231 = vadd.s32 %v221, 4294967272
        %v232 = vperm.slane %v211, %v231
        %vm233 = vcmask 261312
        %v234 = vsel %vm233, %v232, %v230
        %vm235 = vcmask 261120
        %v236 = vsel %vm235, %v234, 0
        %238 = vmatpush.msra.mxu0 0.0
        %239 = vmatpush.msra.mxu0 0.0
        %240 = vmatpush.msra.mxu0 0.0
        %241 = vmatpush.msra.mxu0 0.0
        %242 = vmatpush.msra.mxu0 0.0
        %243 = vmatpush.msra.mxu0 0.0
        %244 = vmatpush.msra.mxu0 0.0
        %245 = vmatpush.msra.mxu0 0.0
        %246 = vmatpush.msra.mxu0 0.0
        %247 = vmatpush.msra.mxu0 0.0
        %248 = vmatpush.msra.mxu0 0.0
        %249 = vmatpush.msra.mxu0 0.0
        %250 = vmatpush.msra.mxu0 %v215
        %251 = vmatpush.msra.mxu0 %v214
        %252 = vmatpush.msra.mxu0 %v213
        %253 = vmatpush.msra.mxu0 %v212
        %254 = vmatmul.f32.gmra.mxu0 %v236
        %v255 = vpop.f32.mrf.mxu0
        %v256 = vadd.f32 0.0, %v255
        %257 = vdwg.mxu0
        %v258 = vsub.f32 0.0, %v256
        %v259 = vmul.f32 %v258, 1.442695
        %v260 = vpow.pop %v259
        %v261 = vadd.f32 %v260, 1.0
        %v262 = vrcp.pop %v261
        %v263 = vmul.f32 %v261, %v262
        %v264 = vsub.f32 1.0, %v263
        %v265 = vmul.f32 %v262, %v264
        %v266 = vadd.f32 %v262, %v265
        %vm267 = vweird.f32 %v261
        %vm268 = vweird.f32 %v262
        %vm269 = vmor %vm267, %vm268
        %v270 = vsel %vm269, %v262, %v266
        %v271 = vand.u32 2147483647, %v261
        %vm272 = vcmp.eq.f32.partialorder %v271, 8.507059e+37
        %v273 = vand.u32 %v261, 2147483648
        %v274 = vor.u32 1.1754944e-38, %v273
        %v275 = vsel %vm272, %v274, %v270
        %v276 = vmul.f32 1.0, %v275
        %v277 = vperm.slane %v276, 0
        %v278 = vlaneseq
        %v279 = vshrl.u32 %v278, 7
        %281 = vset.pattern.permute.xlu0 %v279
        %282 = vperm.xlu0 %281, %v277
        %v283 = vpop.permute.xlu0 %282
        %v284 = vlaneseq
        %v285 = vshrl.u32 %v284, 7
        %v286 = vadd.s32 %v285, 8
        %287 = vset.pattern.permute.xlu0 %v286
        %288 = vperm.xlu0 %287, %v277
        %v289 = vpop.permute.xlu0 %288
        %v290 = vlaneseq
        %v291 = vshrl.u32 %v290, 7
        %v292 = vadd.s32 %v291, 16
        %293 = vset.pattern.permute.xlu0 %v292
        %294 = vperm.xlu0 %293, %v277
        %v295 = vpop.permute.xlu0 %294
        %v296 = vlaneseq
        %v297 = vshrl.u32 %v296, 7
        %v298 = vadd.s32 %v297, 24
        %299 = vset.pattern.permute.xlu0 %v298
        %300 = vperm.xlu0 %299, %v277
        %v301 = vpop.permute.xlu0 %300
        %v302 = vmul.f32 %v181, %v283
        %v303 = vmul.f32 %v182, %v283
        %v304 = vmul.f32 %v183, %v289
        %v305 = vmul.f32 %v184, %v289
        %v306 = vmul.f32 %v185, %v295
        %v307 = vmul.f32 %v186, %v295
        %v308 = vmul.f32 %v187, %v301
        %v309 = vmul.f32 %v188, %v301
        %310 = vst [vmem:[%s180] sm:$0xff] %v302
        %311 = vst [vmem:[%s180 + $0x8] sm:$0xff] %v303
        %312 = vst [vmem:[%s180 + $0x10] sm:$0xff] %v304
        %313 = vst [vmem:[%s180 + $0x18] sm:$0xff] %v305
        %314 = vst [vmem:[%s180 + $0x20] sm:$0xff] %v306
        %315 = vst [vmem:[%s180 + $0x28] sm:$0xff] %v307
        %316 = vst [vmem:[%s180 + $0x30] sm:$0xff] %v308
        %317 = vst [vmem:[%s180 + $0x38] sm:$0xff] %v309
        %s318 = sand.u32 %s75, 1
        %s319 = scalar_lea.sflag [#allocation4], %s318
        %s320 = sand.u32 %s75, 1
        %s321 = smul.addr %s320, 64
        %s322 = scalar_lea.vmem [#allocation7], %s321
        // Predicated region
        $region37: #{tpu_custom_call.1} parent=27 // pred_check
          %p323 = pneg %p85
        $region38: #{tpu_custom_call.1} parent=27 // pred_check_branch
          %325 = sbr.rel (%p323) target = $region40
        $region39: #{tpu_custom_call.1} parent=27 // pred_region
          %327 = vsyncadd %s319, 0
          %s328 = smul.addr %s20, 8
          %s329 = smul.addr %s328, 8
          %s330 = scalar_lea.hbm %s2, %s329
          %s331 = sshll.u32 %s322, 4
          %s332 = int_to_ptr.vmem [resolvable:$true] %s331
          %s333 = sshll.u32 %s330, 4
          %s334 = int_to_ptr.hbm [resolvable:$true] %s333
          %339 = dma.vmem_to_hbm [thread:$0]  %s332, 1024, %s334, %s319, 256, 256, 16
        $region40: #{tpu_custom_call.1} parent=27 // pred_fallthru
          _
      $region28: #{tpu_custom_call.1} parent=5 // pred_fallthru
        _
      %p340 = scmp.le.s32.totalorder 2, %s15
      // Predicated region
      $region41: #{tpu_custom_call.1} parent=5 // pred_check
        %p341 = pneg %p340
      $region42: #{tpu_custom_call.1} parent=5 // pred_check_branch
        %343 = sbr.rel (%p341) target = $region44
      $region43: #{tpu_custom_call.1} parent=5 // pred_region
        %s344 = ssub.s32 %s15, 2
        // Predicated region
        $region45: #{tpu_custom_call.1} parent=43 // pred_check
          %p345 = pneg %p91
        $region46: #{tpu_custom_call.1} parent=43 // pred_check_branch
          %347 = sbr.rel (%p345) target = $region48
        $region47: #{tpu_custom_call.1} parent=43 // pred_region
          %s348 = sand.u32 %s76, 1
          %s349 = scalar_lea.sflag [#allocation4], %s348
          %s350 = sand.u32 %s76, 1
          %s351 = smul.addr %s350, 64
          %s352 = scalar_lea.vmem [#allocation7], %s351
          %354 = dma.done %s349, 1024
        $region48: #{tpu_custom_call.1} parent=43 // pred_fallthru
          _
      $region44: #{tpu_custom_call.1} parent=5 // pred_fallthru
        _
    $region6: #{tpu_custom_call.1} parent=1 // loop_footer
      %s19 = sadd.s32 1, %s15
    $region7: #{tpu_custom_call.1} parent=1 // loop_footer_branch
      %14 = sbr.rel target = $region3
    $region8: #{tpu_custom_call.1} parent=1 // loop_exit
      _
    %355 = vsyncpa [#allocation3], 1
    %s356 = scalar_lea.sflag [#allocation3], 1
    %357 = vsyncpa %s356, 1
    %358 = vsyncpa [#allocation6], 1
    %359 = vsyncpa [#allocation4], 1
    %s360 = scalar_lea.sflag [#allocation4], 1
    %361 = vsyncpa %s360, 1

</llo_original>
